<compile_context>
chip_gen: v7x
topology: tpu7x:2x2x1
jax: 0.10.0
libtpu: 0.0.40
codegen_flags: <defaults>
</compile_context>

<pallas_src>
import jax
import jax.numpy as jnp
from jax.experimental import pallas as pl
from jax.experimental.pallas import tpu as pltpu

EPS = 1e-5
_MIB = 1 << 20


def cast_to_float_bn_kernel(x_ref, scale_ref, shift_ref, o_ref):
    # CastToFloat semantics: the wrapped BatchNorm2d runs in float32; the f32
    # round trip of the input is exact for f16/bf16/f32 so one upcast suffices.
    xf = x_ref[...].astype(jnp.float32)                  # [TR, TL]
    y = xf * scale_ref[...] + shift_ref[...]             # [TR, 1] broadcasts over lanes
    o_ref[...] = y.astype(o_ref.dtype)


def _physical_vmem_bytes():
    try:
        return int(pltpu.get_tpu_info().vmem_capacity_bytes)
    except Exception:
        return 64 * _MIB  # conservative (v7x-sized) fallback


def _align_down(x, a):
    return max(a, (x // a) * a)


def _row_fold_factor(R, L, row_align):
    """Fold part of H*W into the row axis when N*C is small.

    Returns f with L % f == 0 and (L // f) % 128 == 0 (lane-dense), chosen so
    R*f reaches at least two full sublane-packed row blocks when possible.
    """
    target = 2 * row_align
    f = 1
    while R * f < target and L % (2 * f) == 0 and (L // (2 * f)) % 128 == 0:
        f *= 2
    return f


def cast_to_float_batchnorm(x_nchw, gamma, beta, running_mean, running_var):
    """CastToFloat(nn.BatchNorm2d(C)).forward.  x_nchw: [N,C,H,W]; params: [C]."""
    if x_nchw.dtype.name not in ("float32", "bfloat16", "float16"):
        # Dropping the explicit f32 round trip is only exact for these dtypes.
        raise TypeError(f"unsupported input dtype {x_nchw.dtype} for CastToFloat kernel")

    N, C, H, W = x_nchw.shape
    R, L = N * C, H * W
    itemsize = jnp.dtype(x_nchw.dtype).itemsize
    row_align = 16 if itemsize < 4 else 8

    # Fold part of H*W into rows when N*C is below full sublane packing / two
    # row blocks: keeps vregs fully packed and lets the row grid shard.
    f = _row_fold_factor(R, L, row_align)
    Rf, Lf = R * f, L // f
    x2 = x_nchw.reshape(Rf, Lf)                           # lane-dense 2D layout

    # Fold BN params into per-row scale/shift once, in plain JAX (f32).
    scale = gamma.astype(jnp.float32) * jax.lax.rsqrt(
        running_var.astype(jnp.float32) + EPS)
    shift = beta.astype(jnp.float32) - running_mean.astype(jnp.float32) * scale
    scale_rows = jnp.repeat(jnp.tile(scale, N), f).reshape(Rf, 1)   # row r -> channel (r//f) % C
    shift_rows = jnp.repeat(jnp.tile(shift, N), f).reshape(Rf, 1)

    # Per-generation tile budget from physical VMEM (v7x: 64 MiB -> ~3 MiB
    # blocks; v5e/v6e: 128 MiB -> 6 MiB blocks).  2x(in)+2x(out) double
    # buffers + scale/shift always fit comfortably.
    phys_vmem = _physical_vmem_bytes()
    block_budget = max(2 * _MIB, min(6 * _MIB, phys_vmem // 20))

    row_bytes = Lf * itemsize
    if row_align * row_bytes <= block_budget:
        # Preferred path: full-width row bands -> each DMA is one contiguous
        # HBM run; single (row) grid axis.
        TL = Lf
        tr_cap = _align_down(block_budget // row_bytes, row_align)
        if Rf <= tr_cap:
            if Rf >= 2 * row_align:
                # Split into >= 2 blocks so both v7x TensorCores stream.
                TR = _align_down(pl.cdiv(Rf, 2) + row_align - 1, row_align)
            else:
                TR = Rf            # full-extent block (always legal)
        else:
            TR = tr_cap
        grid = (pl.cdiv(Rf, TR),)
        in_specs = [
            pl.BlockSpec((TR, TL), lambda i: (i, 0)),
            pl.BlockSpec((TR, 1), lambda i: (i, 0)),
            pl.BlockSpec((TR, 1), lambda i: (i, 0)),
        ]
        out_specs = pl.BlockSpec((TR, TL), lambda i: (i, 0))
        dims = ("parallel",)
    else:
        # Fallback for very large H*W: tile lanes too.  Column axis stays the
        # last grid dim so the scale/shift blocks (index (i, 0)) stay resident
        # across the inner loop (no re-fetch).
        TR = row_align
        TL = _align_down(block_budget // (TR * itemsize), 128)
        if Lf >= 128:
            TL = min(TL, _align_down(Lf, 128))
        else:
            TL = Lf
        grid = (pl.cdiv(Rf, TR), pl.cdiv(Lf, TL))
        in_specs = [
            pl.BlockSpec((TR, TL), lambda i, j: (i, j)),
            pl.BlockSpec((TR, 1), lambda i, j: (i, 0)),
            pl.BlockSpec((TR, 1), lambda i, j: (i, 0)),
        ]
        out_specs = pl.BlockSpec((TR, TL), lambda i, j: (i, j))
        dims = ("parallel", "parallel")

    # Explicit scoped-VMEM limit sized from the chosen tiles (v5e's default
    # scoped limit is only 16 MiB) and a cost hint for XLA scheduling.
    block_bytes = TR * TL * itemsize
    vmem_limit = int(min(int(phys_vmem * 0.75),
                         max(16 * _MIB, 4 * block_bytes + 8 * _MIB)))
    cost = pl.CostEstimate(
        flops=2 * Rf * Lf,
        transcendentals=0,
        bytes_accessed=2 * Rf * Lf * itemsize + 2 * Rf * 4,
    )

    out = pl.pallas_call(
        cast_to_float_bn_kernel,
        out_shape=jax.ShapeDtypeStruct((Rf, Lf), x_nchw.dtype),
        grid=grid,
        in_specs=in_specs,
        out_specs=out_specs,
        compiler_params=pltpu.CompilerParams(
            dimension_semantics=dims,
            vmem_limit_bytes=vmem_limit,
        ),
        cost_estimate=cost,
    )(x2, scale_rows, shift_rows)
    return out.reshape(N, C, H, W)


def _reference(x, gamma, beta, running_mean, running_var):
    # Pure-JAX reference with the original (unfused) formula.
    xf = x.astype(jnp.float32)
    y = ((xf - running_mean[None, :, None, None])
         * jax.lax.rsqrt(running_var[None, :, None, None] + EPS)
         * gamma[None, :, None, None]
         + beta[None, :, None, None])
    return y.astype(x.dtype)


if __name__ == "__main__":
    key = jax.random.PRNGKey(0)
    kx, kg, kb, km, kv, kx2, kx3 = jax.random.split(key, 7)

    N, C, H, W = 2, 4, 16, 16
    x = jax.random.normal(kx, (N, C, H, W), dtype=jnp.float32).astype(jnp.bfloat16)

    # Deterministic "parameters" of the wrapped BatchNorm2d(C).
    gamma = jax.random.normal(kg, (C,), dtype=jnp.float32) * 0.1 + 1.0
    beta = jax.random.normal(kb, (C,), dtype=jnp.float32) * 0.1
    running_mean = jax.random.normal(km, (C,), dtype=jnp.float32) * 0.1
    running_var = jax.nn.softplus(jax.random.normal(kv, (C,), dtype=jnp.float32)) + 0.5

    out = cast_to_float_batchnorm(x, gamma, beta, running_mean, running_var)
    jax.block_until_ready(out)
    ref = _reference(x, gamma, beta, running_mean, running_var)
    assert out.shape == x.shape and out.dtype == x.dtype
    assert jnp.allclose(out.astype(jnp.float32), ref.astype(jnp.float32),
                        atol=1e-2, rtol=1e-2)

    # Larger bf16 shape: exercises the row-fold (R=8 -> 32) and a 2-block
    # parallel row grid.
    N2, C2, H2, W2 = 2, 4, 64, 64
    x2 = jax.random.normal(kx2, (N2, C2, H2, W2), dtype=jnp.float32).astype(jnp.bfloat16)
    out2 = cast_to_float_batchnorm(x2, gamma, beta, running_mean, running_var)
    jax.block_until_ready(out2)
    ref2 = _reference(x2, gamma, beta, running_mean, running_var)
    assert out2.shape == x2.shape and out2.dtype == x2.dtype
    assert jnp.allclose(out2.astype(jnp.float32), ref2.astype(jnp.float32),
                        atol=1e-2, rtol=1e-2)

    # f32 input with non-128-aligned spatial dims (partial lane handling,
    # tighter tolerance).
    C3 = 3
    gamma3 = jax.random.normal(kg, (C3,), dtype=jnp.float32) * 0.1 + 1.0
    beta3 = jax.random.normal(kb, (C3,), dtype=jnp.float32) * 0.1
    mean3 = jax.random.normal(km, (C3,), dtype=jnp.float32) * 0.1
    var3 = jax.nn.softplus(jax.random.normal(kv, (C3,), dtype=jnp.float32)) + 0.5
    x3 = jax.random.normal(kx3, (1, C3, 20, 20), dtype=jnp.float32)
    out3 = cast_to_float_batchnorm(x3, gamma3, beta3, mean3, var3)
    jax.block_until_ready(out3)
    ref3 = _reference(x3, gamma3, beta3, mean3, var3)
    assert out3.shape == x3.shape and out3.dtype == x3.dtype
    assert jnp.allclose(out3, ref3, atol=1e-4, rtol=1e-4)

    print("KERNEL_OK")
</pallas_src>

<mosaic_0001>
module attributes {stable_mosaic.version = 11 : i64} {
  func.func @cast_to_float_bn_kernel(%arg0: i32, %arg1: memref<16x128xbf16, #tpu.memory_space<vmem>>, %arg2: memref<16x1xf32, #tpu.memory_space<vmem>>, %arg3: memref<16x1xf32, #tpu.memory_space<vmem>>, %arg4: memref<16x128xbf16, #tpu.memory_space<vmem>>) attributes {dimension_semantics = [#tpu.dimension_semantics<parallel>], iteration_bounds = array<i64: 1>, scalar_prefetch = 0 : i64, scratch_operands = 0 : i64, tpu.core_type = #tpu.core_type<tc>, window_params = [{transform_indices = @transform_0, window_bounds = array<i64: 16, 128>}, {transform_indices = @transform_1, window_bounds = array<i64: 16, 1>}, {transform_indices = @transform_2, window_bounds = array<i64: 16, 1>}, {transform_indices = @transform_3, window_bounds = array<i64: 16, 128>}]} {
    %c0 = arith.constant 0 : index
    %c0_0 = arith.constant 0 : index
    %0 = vector.load %arg1[%c0, %c0_0] : memref<16x128xbf16, #tpu.memory_space<vmem>>, vector<16x128xbf16>
    %1 = arith.extf %0 : vector<16x128xbf16> to vector<16x128xf32>
    %c0_1 = arith.constant 0 : index
    %c0_2 = arith.constant 0 : index
    %2 = vector.load %arg2[%c0_1, %c0_2] : memref<16x1xf32, #tpu.memory_space<vmem>>, vector<16x1xf32>
    %3 = vector.broadcast %2 : vector<16x1xf32> to vector<16x128xf32>
    %4 = arith.mulf %1, %3 : vector<16x128xf32>
    %c0_3 = arith.constant 0 : index
    %c0_4 = arith.constant 0 : index
    %5 = vector.load %arg3[%c0_3, %c0_4] : memref<16x1xf32, #tpu.memory_space<vmem>>, vector<16x1xf32>
    %6 = vector.broadcast %5 : vector<16x1xf32> to vector<16x128xf32>
    %7 = arith.addf %4, %6 : vector<16x128xf32>
    %8 = arith.truncf %7 : vector<16x128xf32> to vector<16x128xbf16>
    %c0_5 = arith.constant 0 : index
    %c0_6 = arith.constant 0 : index
    %9 = vector.load %arg4[%c0_5, %c0_6] : memref<16x128xbf16, #tpu.memory_space<vmem>>, vector<16x128xbf16>
    tpu.vector_store %arg4[%c0_5, %c0_6], %8 {strides = array<i32>} : memref<16x128xbf16, #tpu.memory_space<vmem>>, vector<16x128xbf16>,
    return
  }
  func.func @transform_0(%arg0: i32) -> (i32, i32) {
    %c0_i32 = arith.constant 0 : i32
    %c0_i32_0 = arith.constant 0 : i32
    return %arg0, %c0_i32 : i32, i32
  }
  func.func @transform_1(%arg0: i32) -> (i32, i32) {
    %c0_i32 = arith.constant 0 : i32
    %c0_i32_0 = arith.constant 0 : i32
    return %arg0, %c0_i32 : i32, i32
  }
  func.func @transform_2(%arg0: i32) -> (i32, i32) {
    %c0_i32 = arith.constant 0 : i32
    %c0_i32_0 = arith.constant 0 : i32
    return %arg0, %c0_i32 : i32, i32
  }
  func.func @transform_3(%arg0: i32) -> (i32, i32) {
    %c0_i32 = arith.constant 0 : i32
    %c0_i32_0 = arith.constant 0 : i32
    return %arg0, %c0_i32 : i32, i32
  }
}

</mosaic_0001>

<llo_original>
// kernel: tpu_custom_call.1
$region0: #{tpu_custom_call.1}
  #allocation0 [shape = 'u32[]', space=smem, size = 0x4, offset = 0x4, fixed_abs, tag = 'smem constant byte address 0x4 - core index']
  #allocation1 [shape = 'u32[144,128]{1,0:T(1,128)}', space=vmem, size = 0x12000, scoped, tag = 'internal scratch']
  %s0 = inlined_call_operand.vmem [shape: bf16[16,128], index: 0, kind: input, shape index: {}]
  %s1 = inlined_call_operand.vmem [shape: f32[16,1], index: 1, kind: input, shape index: {}]
  %s2 = inlined_call_operand.vmem [shape: f32[16,1], index: 2, kind: input, shape index: {}]
  %s3 = inlined_call_operand.hbm [shape: bf16[16,128], index: 3, kind: output, shape index: {}]
  %s4 = sld [smem:[#allocation0]]
  $region22: #{tpu_custom_call.1} parent=0
    _
  %s6 = ssub.s32 1, %s4
  %s7 = scalar_select 0, %s6, %s4
  $region1: #{tpu_custom_call.1} parent=0
    #allocation2 [shape = 'u8[4096]{0}', space=vmem, size = 0x1000, scoped, tag = 'output window, operand 0, single buffered']
    #allocation3 [shape = 's32[1]{0}', space=sflag, size = 0x4, scoped, tag = 'scoped memory for tpu_custom_call.1']
    %8 = vsyncpa [#allocation3], 0
    // Predicated region
    $region2: #{tpu_custom_call.1} parent=1 // pred_check
      _
    $region3: #{tpu_custom_call.1} parent=1 // pred_check_branch
      %10 = sbr.rel (0) target = $region5
    $region4: #{tpu_custom_call.1} parent=1 // pred_region
      _
    $region5: #{tpu_custom_call.1} parent=1 // pred_fallthru
      _
    // Predicated region
    $region6: #{tpu_custom_call.1} parent=1 // pred_check
      _
    $region7: #{tpu_custom_call.1} parent=1 // pred_check_branch
      %12 = sbr.rel (0) target = $region9
    $region8: #{tpu_custom_call.1} parent=1 // pred_region
      _
    $region9: #{tpu_custom_call.1} parent=1 // pred_fallthru
      _
    // Predicated region
    $region10: #{tpu_custom_call.1} parent=1 // pred_check
      _
    $region11: #{tpu_custom_call.1} parent=1 // pred_check_branch
      %14 = sbr.rel (0) target = $region13
    $region12: #{tpu_custom_call.1} parent=1 // pred_region
      _
    $region13: #{tpu_custom_call.1} parent=1 // pred_fallthru
      _
    %v15 = vld [vmem:[%s0] sm:$0xf]
    %v16 = vld [vmem:[%s0 + $0x4] sm:$0xf]
    %v17 = vunpack.c.l.bf16 %v15
    %v18 = vunpack.c.l.bf16 %v16
    %v19 = vld [vmem:[%s1] sm:$0xff]
    %v20 = vld [vmem:[%s1 + $0x8] sm:$0xff]
    %22 = vset.pattern.permute.xlu0 0
    %23 = vperm.xlu0 %22, %v19
    %v24 = vpop.permute.xlu0 %23
    %27 = vset.pattern.permute.xlu0 0
    %28 = vperm.xlu0 %27, %v20
    %v29 = vpop.permute.xlu0 %28
    %v31 = vmul.f32 %v17, %v24
    %v32 = vmul.f32 %v18, %v29
    %v33 = vld [vmem:[%s2] sm:$0xff]
    %v34 = vld [vmem:[%s2 + $0x8] sm:$0xff]
    %36 = vset.pattern.permute.xlu0 0
    %37 = vperm.xlu0 %36, %v33
    %v38 = vpop.permute.xlu0 %37
    %41 = vset.pattern.permute.xlu0 0
    %42 = vperm.xlu0 %41, %v34
    %v43 = vpop.permute.xlu0 %42
    %v45 = vadd.f32 %v31, %v38
    %v46 = vadd.f32 %v32, %v43
    %v47 = vpack.c.bf16 %v46, %v45
    %v49 = vunpack.c.l.b16 %v47
    %v50 = vunpack.c.h.b16 %v47
    %v51 = vpack.c.b16 %v49, %v49
    %v52 = vpack.c.b16 %v50, %v50
    %55 = vst [vmem:[#allocation2] sm:$0xf] %v51
    %56 = vst [vmem:[#allocation2 + $0x4] sm:$0xf] %v52
    // Predicated region
    $region14: #{tpu_custom_call.1} parent=1 // pred_check
      _
    $region15: #{tpu_custom_call.1} parent=1 // pred_check_branch
      %58 = sbr.rel (0) target = $region17
    $region16: #{tpu_custom_call.1} parent=1 // pred_region
      %s60 = ssub.s32 128, 128
      %61 = vsyncadd [#allocation3], %s60
      %s62 = sshll.u32 [#allocation2], 4
      %s63 = int_to_ptr.vmem [resolvable:$true] %s62
      %68 = dma.vmem_to_hbm [thread:$0]  %s63, 128, %s3, [#allocation3], 64, 64, 4
    $region17: #{tpu_custom_call.1} parent=1 // pred_fallthru
      _
    // Predicated region
    $region18: #{tpu_custom_call.1} parent=1 // pred_check
      _
    $region19: #{tpu_custom_call.1} parent=1 // pred_check_branch
      %70 = sbr.rel (0) target = $region21
    $region20: #{tpu_custom_call.1} parent=1 // pred_region
      %71 = dma.done [#allocation3], 128
    $region21: #{tpu_custom_call.1} parent=1 // pred_fallthru
      _
    %72 = vsyncpa [#allocation3], 1

</llo_original>
